<compile_context>
chip_gen: v5e
topology: v5e:2x2
jax: 0.10.0
libtpu: 0.0.40
codegen_flags: <defaults>
</compile_context>

<pallas_src>
import jax
import jax.numpy as jnp
import numpy as np
from jax import lax
from jax.experimental import pallas as pl
from jax.experimental.pallas import tpu as pltpu

LANE = 128


# ---------------------------- Pallas kernel ----------------------------

def haar_fwd_kernel(w_ref, p_ref, o_ref):
    # w_ref: (4, 4) f32 in SMEM -- scaled Haar coefficients; rows = output k,
    #        cols = 2x2 taps (p00, p01, p10, p11); 1/(a*d-b*c)^2 already folded in.
    # p_ref: (4, TR, 128) VMEM -- the four taps of a flat chunk of 2x2 blocks.
    # o_ref: (4, TR, 128) VMEM -- the four Haar outputs for the same chunk.
    p0 = p_ref[0]
    p1 = p_ref[1]
    p2 = p_ref[2]
    p3 = p_ref[3]
    for k in range(4):  # static unroll: 4 outputs, 4 scalar*vector FMAs each (VPU)
        acc = w_ref[k, 0] * p0
        acc = acc + w_ref[k, 1] * p1
        acc = acc + w_ref[k, 2] * p2
        acc = acc + w_ref[k, 3] * p3
        o_ref[k] = acc.astype(o_ref.dtype)


# ---------------------------- wrapper ----------------------------

def _haar_coeffs(a, b, c, d):
    a = jnp.asarray(a, jnp.float32)
    b = jnp.asarray(b, jnp.float32)
    c = jnp.asarray(c, jnp.float32)
    d = jnp.asarray(d, jnp.float32)
    det2 = (a * d - b * c) ** 2
    # Rows follow the PyTorch filter order k=0..3; columns follow taps
    # (dy,dx) = (0,0),(0,1),(1,0),(1,1).  The output scale is folded in here.
    w = jnp.stack([
        jnp.stack([a * a, a * b, a * b, b * b]),
        jnp.stack([a * c, a * d, b * c, b * d]),
        jnp.stack([a * c, b * c, a * d, b * d]),
        jnp.stack([c * c, c * d, c * d, d * d]),
    ])
    return (w / det2).astype(jnp.float32)


def haar_downsampling_fwd(x, a=1.0, b=1.0, c=1.0, d=-1.0, *, tile_rows=1024):
    """Forward (rev=False) HaarDownsampling: NCHW (N,C,H,W) -> (N, 4C, H/2, W/2)."""
    N, C, H, W = x.shape
    assert H % 2 == 0 and W % 2 == 0, "spatial dims must be even"
    Hh, Wh = H // 2, W // 2
    M = N * C * Hh * Wh

    w4 = _haar_coeffs(a, b, c, d)

    # Deinterleave 2x2 blocks -> 4 tap planes (layout glue; zero size expansion).
    taps = jnp.transpose(x.reshape(N, C, Hh, 2, Wh, 2), (3, 5, 0, 1, 2, 4))
    taps = taps.reshape(4, M).astype(jnp.float32)

    # Lane-dense packing: last dim 128; tile the sublane (row) dim.
    Mp = ((M + LANE - 1) // LANE) * LANE
    if Mp != M:
        taps = jnp.pad(taps, ((0, 0), (0, Mp - M)))
    R = Mp // LANE
    if R <= tile_rows:
        TR, Rp = R, R
    else:
        TR = tile_rows                      # multiple of 8; ~2 MiB per tap-slab tile
        Rp = ((R + TR - 1) // TR) * TR
        if Rp != R:
            taps = jnp.pad(taps.reshape(4, R, LANE),
                           ((0, 0), (0, Rp - R), (0, 0))).reshape(4, Rp * LANE)
    taps = taps.reshape(4, Rp, LANE)

    out = pl.pallas_call(
        haar_fwd_kernel,
        out_shape=jax.ShapeDtypeStruct((4, Rp, LANE), jnp.float32),
        grid=(Rp // TR,),
        in_specs=[
            pl.BlockSpec(memory_space=pltpu.MemorySpace.SMEM),    # (4,4) coefficients
            pl.BlockSpec((4, TR, LANE), lambda i: (0, i, 0)),     # taps
        ],
        out_specs=pl.BlockSpec((4, TR, LANE), lambda i: (0, i, 0)),
        compiler_params=pltpu.CompilerParams(dimension_semantics=("parallel",)),
    )(w4, taps)

    out = out.reshape(4, Rp * LANE)[:, :M]                 # drop padding
    out = out.reshape(4, N, C, Hh, Wh)
    # Module ordering: out channel index = k * C + c   (reshape->transpose->reshape)
    out = jnp.transpose(out, (1, 0, 2, 3, 4)).reshape(N, 4 * C, Hh, Wh)
    return out.astype(x.dtype)


def haar_jacobian(x_shape, rev=False):
    # Bookkeeping value the module stores as self.last_jac (scalar, no kernel needed).
    _, C, H, W = x_shape
    elements = C * H * W
    return elements / 4.0 * (np.log(1.0 / 16.0) if not rev else np.log(16.0))


# ---------------------------- pure-JAX reference ----------------------------

def ref_haar_downsampling(x, a=1.0, b=1.0, c=1.0, d=-1.0):
    N, C, H, W = x.shape
    a, b, c, d = (jnp.asarray(v, jnp.float32) for v in (a, b, c, d))
    base = jnp.stack([
        jnp.stack([jnp.stack([a * a, a * b]), jnp.stack([a * b, b * b])]),
        jnp.stack([jnp.stack([a * c, a * d]), jnp.stack([b * c, b * d])]),
        jnp.stack([jnp.stack([a * c, b * c]), jnp.stack([a * d, b * d])]),
        jnp.stack([jnp.stack([c * c, c * d]), jnp.stack([c * d, d * d])]),
    ])[:, None]                              # (4, 1, 2, 2)
    wgt = jnp.tile(base, (C, 1, 1, 1))       # (4C, 1, 2, 2), groups = C layout
    out = lax.conv_general_dilated(
        x, wgt, window_strides=(2, 2), padding="VALID",
        dimension_numbers=("NCHW", "OIHW", "NCHW"),
        feature_group_count=C) / (a * d - b * c) ** 2
    out = out.reshape(N, C, 4, H // 2, W // 2)
    out = jnp.transpose(out, (0, 2, 1, 3, 4)).reshape(N, 4 * C, H // 2, W // 2)
    return out


# ---------------------------- main ----------------------------

if __name__ == "__main__":
    key = jax.random.PRNGKey(0)
    N, C, H, W = 2, 4, 16, 16
    x = jax.random.normal(key, (N, C, H, W), jnp.float32)   # PyTorch NCHW input

    # Module parameter defaults: a = b = c = 1, d = -1 (trainable=False).
    a, b, c, d = 1.0, 1.0, 1.0, -1.0

    out = haar_downsampling_fwd(x, a, b, c, d)
    out = jax.block_until_ready(out)
    assert out.shape == (N, 4 * C, H // 2, W // 2)

    ref = ref_haar_downsampling(x, a, b, c, d)
    np.testing.assert_allclose(np.asarray(out), np.asarray(ref), rtol=1e-5, atol=1e-5)
    print("KERNEL_OK")
</pallas_src>

<mosaic_0001>
module attributes {stable_mosaic.version = 11 : i64} {
  func.func @haar_fwd_kernel(%arg0: i32, %arg1: memref<4x4xf32, #tpu.memory_space<smem>>, %arg2: memref<4x4x128xf32, #tpu.memory_space<vmem>>, %arg3: memref<4x4x128xf32, #tpu.memory_space<vmem>>) attributes {dimension_semantics = [#tpu.dimension_semantics<parallel>], iteration_bounds = array<i64: 1>, scalar_prefetch = 0 : i64, scratch_operands = 0 : i64, tpu.core_type = #tpu.core_type<tc>, window_params = [{transform_indices = @transform_0, window_bounds = array<i64: 4, 4>}, {transform_indices = @transform_1, window_bounds = array<i64: 4, 4, 128>}, {transform_indices = @transform_2, window_bounds = array<i64: 4, 4, 128>}]} {
    %c0 = arith.constant 0 : index
    %c0_0 = arith.constant 0 : index
    %c0_1 = arith.constant 0 : index
    %0 = vector.load %arg2[%c0, %c0_0, %c0_1] : memref<4x4x128xf32, #tpu.memory_space<vmem>>, vector<1x4x128xf32>
    %1 = vector.shape_cast %0 : vector<1x4x128xf32> to vector<4x128xf32>
    %c1 = arith.constant 1 : index
    %c0_2 = arith.constant 0 : index
    %c0_3 = arith.constant 0 : index
    %2 = vector.load %arg2[%c1, %c0_2, %c0_3] : memref<4x4x128xf32, #tpu.memory_space<vmem>>, vector<1x4x128xf32>
    %3 = vector.shape_cast %2 : vector<1x4x128xf32> to vector<4x128xf32>
    %c2 = arith.constant 2 : index
    %c0_4 = arith.constant 0 : index
    %c0_5 = arith.constant 0 : index
    %4 = vector.load %arg2[%c2, %c0_4, %c0_5] : memref<4x4x128xf32, #tpu.memory_space<vmem>>, vector<1x4x128xf32>
    %5 = vector.shape_cast %4 : vector<1x4x128xf32> to vector<4x128xf32>
    %c3 = arith.constant 3 : index
    %c0_6 = arith.constant 0 : index
    %c0_7 = arith.constant 0 : index
    %6 = vector.load %arg2[%c3, %c0_6, %c0_7] : memref<4x4x128xf32, #tpu.memory_space<vmem>>, vector<1x4x128xf32>
    %7 = vector.shape_cast %6 : vector<1x4x128xf32> to vector<4x128xf32>
    %c0_8 = arith.constant 0 : index
    %c0_9 = arith.constant 0 : index
    %8 = memref.load %arg1[%c0_8, %c0_9] : memref<4x4xf32, #tpu.memory_space<smem>>
    %9 = vector.broadcast %8 : f32 to vector<4x128xf32>
    %10 = arith.mulf %9, %1 : vector<4x128xf32>
    %c0_10 = arith.constant 0 : index
    %c1_11 = arith.constant 1 : index
    %11 = memref.load %arg1[%c0_10, %c1_11] : memref<4x4xf32, #tpu.memory_space<smem>>
    %12 = vector.broadcast %11 : f32 to vector<4x128xf32>
    %13 = arith.mulf %12, %3 : vector<4x128xf32>
    %14 = arith.addf %10, %13 : vector<4x128xf32>
    %c0_12 = arith.constant 0 : index
    %c2_13 = arith.constant 2 : index
    %15 = memref.load %arg1[%c0_12, %c2_13] : memref<4x4xf32, #tpu.memory_space<smem>>
    %16 = vector.broadcast %15 : f32 to vector<4x128xf32>
    %17 = arith.mulf %16, %5 : vector<4x128xf32>
    %18 = arith.addf %14, %17 : vector<4x128xf32>
    %c0_14 = arith.constant 0 : index
    %c3_15 = arith.constant 3 : index
    %19 = memref.load %arg1[%c0_14, %c3_15] : memref<4x4xf32, #tpu.memory_space<smem>>
    %20 = vector.broadcast %19 : f32 to vector<4x128xf32>
    %21 = arith.mulf %20, %7 : vector<4x128xf32>
    %22 = arith.addf %18, %21 : vector<4x128xf32>
    %c0_16 = arith.constant 0 : index
    %c0_17 = arith.constant 0 : index
    %c0_18 = arith.constant 0 : index
    %23 = vector.load %arg3[%c0_16, %c0_17, %c0_18] : memref<4x4x128xf32, #tpu.memory_space<vmem>>, vector<1x4x128xf32>
    %24 = vector.shape_cast %23 : vector<1x4x128xf32> to vector<4x128xf32>
    %25 = vector.shape_cast %22 : vector<4x128xf32> to vector<1x4x128xf32>
    tpu.vector_store %arg3[%c0_16, %c0_17, %c0_18], %25 {strides = array<i32>} : memref<4x4x128xf32, #tpu.memory_space<vmem>>, vector<1x4x128xf32>,
    %c1_19 = arith.constant 1 : index
    %c0_20 = arith.constant 0 : index
    %26 = memref.load %arg1[%c1_19, %c0_20] : memref<4x4xf32, #tpu.memory_space<smem>>
    %27 = vector.broadcast %26 : f32 to vector<4x128xf32>
    %28 = arith.mulf %27, %1 : vector<4x128xf32>
    %c1_21 = arith.constant 1 : index
    %c1_22 = arith.constant 1 : index
    %29 = memref.load %arg1[%c1_21, %c1_22] : memref<4x4xf32, #tpu.memory_space<smem>>
    %30 = vector.broadcast %29 : f32 to vector<4x128xf32>
    %31 = arith.mulf %30, %3 : vector<4x128xf32>
    %32 = arith.addf %28, %31 : vector<4x128xf32>
    %c1_23 = arith.constant 1 : index
    %c2_24 = arith.constant 2 : index
    %33 = memref.load %arg1[%c1_23, %c2_24] : memref<4x4xf32, #tpu.memory_space<smem>>
    %34 = vector.broadcast %33 : f32 to vector<4x128xf32>
    %35 = arith.mulf %34, %5 : vector<4x128xf32>
    %36 = arith.addf %32, %35 : vector<4x128xf32>
    %c1_25 = arith.constant 1 : index
    %c3_26 = arith.constant 3 : index
    %37 = memref.load %arg1[%c1_25, %c3_26] : memref<4x4xf32, #tpu.memory_space<smem>>
    %38 = vector.broadcast %37 : f32 to vector<4x128xf32>
    %39 = arith.mulf %38, %7 : vector<4x128xf32>
    %40 = arith.addf %36, %39 : vector<4x128xf32>
    %c1_27 = arith.constant 1 : index
    %c0_28 = arith.constant 0 : index
    %c0_29 = arith.constant 0 : index
    %41 = vector.load %arg3[%c1_27, %c0_28, %c0_29] : memref<4x4x128xf32, #tpu.memory_space<vmem>>, vector<1x4x128xf32>
    %42 = vector.shape_cast %41 : vector<1x4x128xf32> to vector<4x128xf32>
    %43 = vector.shape_cast %40 : vector<4x128xf32> to vector<1x4x128xf32>
    tpu.vector_store %arg3[%c1_27, %c0_28, %c0_29], %43 {strides = array<i32>} : memref<4x4x128xf32, #tpu.memory_space<vmem>>, vector<1x4x128xf32>,
    %c2_30 = arith.constant 2 : index
    %c0_31 = arith.constant 0 : index
    %44 = memref.load %arg1[%c2_30, %c0_31] : memref<4x4xf32, #tpu.memory_space<smem>>
    %45 = vector.broadcast %44 : f32 to vector<4x128xf32>
    %46 = arith.mulf %45, %1 : vector<4x128xf32>
    %c2_32 = arith.constant 2 : index
    %c1_33 = arith.constant 1 : index
    %47 = memref.load %arg1[%c2_32, %c1_33] : memref<4x4xf32, #tpu.memory_space<smem>>
    %48 = vector.broadcast %47 : f32 to vector<4x128xf32>
    %49 = arith.mulf %48, %3 : vector<4x128xf32>
    %50 = arith.addf %46, %49 : vector<4x128xf32>
    %c2_34 = arith.constant 2 : index
    %c2_35 = arith.constant 2 : index
    %51 = memref.load %arg1[%c2_34, %c2_35] : memref<4x4xf32, #tpu.memory_space<smem>>
    %52 = vector.broadcast %51 : f32 to vector<4x128xf32>
    %53 = arith.mulf %52, %5 : vector<4x128xf32>
    %54 = arith.addf %50, %53 : vector<4x128xf32>
    %c2_36 = arith.constant 2 : index
    %c3_37 = arith.constant 3 : index
    %55 = memref.load %arg1[%c2_36, %c3_37] : memref<4x4xf32, #tpu.memory_space<smem>>
    %56 = vector.broadcast %55 : f32 to vector<4x128xf32>
    %57 = arith.mulf %56, %7 : vector<4x128xf32>
    %58 = arith.addf %54, %57 : vector<4x128xf32>
    %c2_38 = arith.constant 2 : index
    %c0_39 = arith.constant 0 : index
    %c0_40 = arith.constant 0 : index
    %59 = vector.load %arg3[%c2_38, %c0_39, %c0_40] : memref<4x4x128xf32, #tpu.memory_space<vmem>>, vector<1x4x128xf32>
    %60 = vector.shape_cast %59 : vector<1x4x128xf32> to vector<4x128xf32>
    %61 = vector.shape_cast %58 : vector<4x128xf32> to vector<1x4x128xf32>
    tpu.vector_store %arg3[%c2_38, %c0_39, %c0_40], %61 {strides = array<i32>} : memref<4x4x128xf32, #tpu.memory_space<vmem>>, vector<1x4x128xf32>,
    %c3_41 = arith.constant 3 : index
    %c0_42 = arith.constant 0 : index
    %62 = memref.load %arg1[%c3_41, %c0_42] : memref<4x4xf32, #tpu.memory_space<smem>>
    %63 = vector.broadcast %62 : f32 to vector<4x128xf32>
    %64 = arith.mulf %63, %1 : vector<4x128xf32>
    %c3_43 = arith.constant 3 : index
    %c1_44 = arith.constant 1 : index
    %65 = memref.load %arg1[%c3_43, %c1_44] : memref<4x4xf32, #tpu.memory_space<smem>>
    %66 = vector.broadcast %65 : f32 to vector<4x128xf32>
    %67 = arith.mulf %66, %3 : vector<4x128xf32>
    %68 = arith.addf %64, %67 : vector<4x128xf32>
    %c3_45 = arith.constant 3 : index
    %c2_46 = arith.constant 2 : index
    %69 = memref.load %arg1[%c3_45, %c2_46] : memref<4x4xf32, #tpu.memory_space<smem>>
    %70 = vector.broadcast %69 : f32 to vector<4x128xf32>
    %71 = arith.mulf %70, %5 : vector<4x128xf32>
    %72 = arith.addf %68, %71 : vector<4x128xf32>
    %c3_47 = arith.constant 3 : index
    %c3_48 = arith.constant 3 : index
    %73 = memref.load %arg1[%c3_47, %c3_48] : memref<4x4xf32, #tpu.memory_space<smem>>
    %74 = vector.broadcast %73 : f32 to vector<4x128xf32>
    %75 = arith.mulf %74, %7 : vector<4x128xf32>
    %76 = arith.addf %72, %75 : vector<4x128xf32>
    %c3_49 = arith.constant 3 : index
    %c0_50 = arith.constant 0 : index
    %c0_51 = arith.constant 0 : index
    %77 = vector.load %arg3[%c3_49, %c0_50, %c0_51] : memref<4x4x128xf32, #tpu.memory_space<vmem>>, vector<1x4x128xf32>
    %78 = vector.shape_cast %77 : vector<1x4x128xf32> to vector<4x128xf32>
    %79 = vector.shape_cast %76 : vector<4x128xf32> to vector<1x4x128xf32>
    tpu.vector_store %arg3[%c3_49, %c0_50, %c0_51], %79 {strides = array<i32>} : memref<4x4x128xf32, #tpu.memory_space<vmem>>, vector<1x4x128xf32>,
    return
  }
  func.func @transform_0(%arg0: i32) -> (i32, i32) {
    %c0_i32 = arith.constant 0 : i32
    %c0_i32_0 = arith.constant 0 : i32
    %c0_i32_1 = arith.constant 0 : i32
    return %c0_i32, %c0_i32_0 : i32, i32
  }
  func.func @transform_1(%arg0: i32) -> (i32, i32, i32) {
    %c0_i32 = arith.constant 0 : i32
    %c0_i32_0 = arith.constant 0 : i32
    %c0_i32_1 = arith.constant 0 : i32
    return %c0_i32, %arg0, %c0_i32_0 : i32, i32, i32
  }
  func.func @transform_2(%arg0: i32) -> (i32, i32, i32) {
    %c0_i32 = arith.constant 0 : i32
    %c0_i32_0 = arith.constant 0 : i32
    %c0_i32_1 = arith.constant 0 : i32
    return %c0_i32, %arg0, %c0_i32_0 : i32, i32, i32
  }
}

</mosaic_0001>

<llo_original>
// kernel: tpu_custom_call.1
$region0: #{tpu_custom_call.1}
  #allocation0 [shape = 'u32[]', space=smem, size = 0x4, offset = 0x4, fixed_abs, tag = 'smem constant byte address 0x4 - core index']
  #allocation1 [shape = 'u32[72,128]{1,0:T(1,128)}', space=vmem, size = 0x9000, scoped, tag = 'internal scratch']
  %s0 = inlined_call_operand.hbm [shape: f32[4,4], index: 0, kind: input, shape index: {}]
  %s1 = inlined_call_operand.hbm [shape: f32[4,4,128], index: 1, kind: input, shape index: {}]
  %s2 = inlined_call_operand.hbm [shape: f32[4,4,128], index: 2, kind: output, shape index: {}]
  %s3 = sld [smem:[#allocation0]]
  $region26: #{tpu_custom_call.1} parent=0
    _
  %s5 = ssub.s32 1, %s3
  %s6 = scalar_select 0, %s5, %s3
  $region1: #{tpu_custom_call.1} parent=0
    #allocation2 [shape = 'u8[2048]{0}', space=smem, size = 0x800, scoped, tag = 'input window, operand 0, single buffered']
    #allocation3 [shape = 's32[1]{0}', space=sflag, size = 0x4, scoped, tag = 'scoped memory for tpu_custom_call.1']
    #allocation4 [shape = 's32[1]{0}', space=sflag, size = 0x4, scoped, tag = 'scoped memory for tpu_custom_call.1']
    #allocation5 [shape = 's32[1]{0}', space=sflag, size = 0x4, scoped, tag = 'scoped memory for tpu_custom_call.1']
    #allocation6 [shape = 'u8[8192]{0}', space=vmem, size = 0x2000, scoped, tag = 'input window, operand 1, single buffered']
    #allocation7 [shape = 'u8[8192]{0}', space=vmem, size = 0x2000, scoped, tag = 'output window, operand 0, single buffered']
    %7 = vsyncpa [#allocation5], 0
    %8 = vsyncpa [#allocation3], 0
    %9 = vsyncpa [#allocation4], 0
    // Predicated region
    $region2: #{tpu_custom_call.1} parent=1 // pred_check
      _
    $region3: #{tpu_custom_call.1} parent=1 // pred_check_branch
      %11 = sbr.rel (0) target = $region5
    $region4: #{tpu_custom_call.1} parent=1 // pred_region
      %13 = vsyncadd [#allocation5], 0
      %s15 = sshll.u32 %s0, 4
      %s16 = int_to_ptr.hbm [resolvable:$true] %s15
      %18 = dma.hbm_to_smem %s16, 64, [#allocation2], [#allocation5]
    $region5: #{tpu_custom_call.1} parent=1 // pred_fallthru
      _
    // Predicated region
    $region6: #{tpu_custom_call.1} parent=1 // pred_check
      _
    $region7: #{tpu_custom_call.1} parent=1 // pred_check_branch
      %20 = sbr.rel (0) target = $region9
    $region8: #{tpu_custom_call.1} parent=1 // pred_region
      %22 = vsyncadd [#allocation3], 0
      %s23 = sshll.u32 %s1, 4
      %s24 = int_to_ptr.hbm [resolvable:$true] %s23
      %s25 = sshll.u32 [#allocation6], 4
      %s26 = int_to_ptr.vmem [resolvable:$true] %s25
      %31 = dma.hbm_to_vmem [thread:$0]  %s24, 256, %s26, [#allocation3], 64, 64, 4
    $region9: #{tpu_custom_call.1} parent=1 // pred_fallthru
      _
    // Predicated region
    $region10: #{tpu_custom_call.1} parent=1 // pred_check
      _
    $region11: #{tpu_custom_call.1} parent=1 // pred_check_branch
      %33 = sbr.rel (0) target = $region13
    $region12: #{tpu_custom_call.1} parent=1 // pred_region
      %35 = dma.done [#allocation5], 64
    $region13: #{tpu_custom_call.1} parent=1 // pred_fallthru
      _
    // Predicated region
    $region14: #{tpu_custom_call.1} parent=1 // pred_check
      _
    $region15: #{tpu_custom_call.1} parent=1 // pred_check_branch
      %37 = sbr.rel (0) target = $region17
    $region16: #{tpu_custom_call.1} parent=1 // pred_region
      %39 = dma.done [#allocation3], 256
    $region17: #{tpu_custom_call.1} parent=1 // pred_fallthru
      _
    %40 = sfence
    %v41 = vld [vmem:[#allocation6] sm:$0xf]
    %s42 = scalar_lea.vmem [#allocation6], 4
    %v43 = vld [vmem:[%s42] sm:$0xf]
    %s44 = scalar_lea.vmem [#allocation6], 8
    %v45 = vld [vmem:[%s44] sm:$0xf]
    %s46 = scalar_lea.vmem [#allocation6], 12
    %v47 = vld [vmem:[%s46] sm:$0xf]
    %s48 = sld [smem:[#allocation2]]
    %v49 = vstv %s48
    %v50 = vmul.f32 %v49, %v41
    %s51 = sld [smem:[#allocation2 + $0x1]]
    %v52 = vstv %s51
    %v53 = vmul.f32 %v52, %v43
    %v54 = vadd.f32 %v50, %v53
    %s55 = sld [smem:[#allocation2 + $0x2]]
    %v56 = vstv %s55
    %v57 = vmul.f32 %v56, %v45
    %v58 = vadd.f32 %v54, %v57
    %s59 = sld [smem:[#allocation2 + $0x3]]
    %v60 = vstv %s59
    %v61 = vmul.f32 %v60, %v47
    %v62 = vadd.f32 %v58, %v61
    %63 = vst [vmem:[#allocation7] sm:$0xf] %v62
    %s64 = sld [smem:[#allocation2 + $0x80]]
    %v65 = vstv %s64
    %v66 = vmul.f32 %v65, %v41
    %s67 = sld [smem:[#allocation2 + $0x81]]
    %v68 = vstv %s67
    %v69 = vmul.f32 %v68, %v43
    %v70 = vadd.f32 %v66, %v69
    %s71 = sld [smem:[#allocation2 + $0x82]]
    %v72 = vstv %s71
    %v73 = vmul.f32 %v72, %v45
    %v74 = vadd.f32 %v70, %v73
    %s75 = sld [smem:[#allocation2 + $0x83]]
    %v76 = vstv %s75
    %v77 = vmul.f32 %v76, %v47
    %v78 = vadd.f32 %v74, %v77
    %s79 = scalar_lea.vmem [#allocation7], 4
    %80 = vst [vmem:[%s79] sm:$0xf] %v78
    %s81 = sld [smem:[#allocation2 + $0x100]]
    %v82 = vstv %s81
    %v83 = vmul.f32 %v82, %v41
    %s84 = sld [smem:[#allocation2 + $0x101]]
    %v85 = vstv %s84
    %v86 = vmul.f32 %v85, %v43
    %v87 = vadd.f32 %v83, %v86
    %s88 = sld [smem:[#allocation2 + $0x102]]
    %v89 = vstv %s88
    %v90 = vmul.f32 %v89, %v45
    %v91 = vadd.f32 %v87, %v90
    %s92 = sld [smem:[#allocation2 + $0x103]]
    %v93 = vstv %s92
    %v94 = vmul.f32 %v93, %v47
    %v95 = vadd.f32 %v91, %v94
    %s96 = scalar_lea.vmem [#allocation7], 8
    %97 = vst [vmem:[%s96] sm:$0xf] %v95
    %s98 = sld [smem:[#allocation2 + $0x180]]
    %v99 = vstv %s98
    %v100 = vmul.f32 %v99, %v41
    %s101 = sld [smem:[#allocation2 + $0x181]]
    %v102 = vstv %s101
    %v103 = vmul.f32 %v102, %v43
    %v104 = vadd.f32 %v100, %v103
    %s105 = sld [smem:[#allocation2 + $0x182]]
    %v106 = vstv %s105
    %v107 = vmul.f32 %v106, %v45
    %v108 = vadd.f32 %v104, %v107
    %s109 = sld [smem:[#allocation2 + $0x183]]
    %v110 = vstv %s109
    %v111 = vmul.f32 %v110, %v47
    %v112 = vadd.f32 %v108, %v111
    %s113 = scalar_lea.vmem [#allocation7], 12
    %114 = vst [vmem:[%s113] sm:$0xf] %v112
    // Predicated region
    $region18: #{tpu_custom_call.1} parent=1 // pred_check
      _
    $region19: #{tpu_custom_call.1} parent=1 // pred_check_branch
      %116 = sbr.rel (0) target = $region21
    $region20: #{tpu_custom_call.1} parent=1 // pred_region
      %118 = vsyncadd [#allocation4], 0
      %s119 = sshll.u32 [#allocation7], 4
      %s120 = int_to_ptr.vmem [resolvable:$true] %s119
      %s121 = sshll.u32 %s2, 4
      %s122 = int_to_ptr.hbm [resolvable:$true] %s121
      %127 = dma.vmem_to_hbm [thread:$0]  %s120, 256, %s122, [#allocation4], 64, 64, 4
    $region21: #{tpu_custom_call.1} parent=1 // pred_fallthru
      _
    // Predicated region
    $region22: #{tpu_custom_call.1} parent=1 // pred_check
      _
    $region23: #{tpu_custom_call.1} parent=1 // pred_check_branch
      %129 = sbr.rel (0) target = $region25
    $region24: #{tpu_custom_call.1} parent=1 // pred_region
      %131 = dma.done [#allocation4], 256
    $region25: #{tpu_custom_call.1} parent=1 // pred_fallthru
      _
    %132 = vsyncpa [#allocation3], 1
    %133 = vsyncpa [#allocation4], 1
    %134 = vsyncpa [#allocation5], 1

</llo_original>
